<compile_context>
chip_gen: v7x
topology: tpu7x:2x2x1
jax: 0.10.0
libtpu: 0.0.40
codegen_flags: <defaults>
</compile_context>

<pallas_src>
import jax
import jax.numpy as jnp
from jax.experimental import pallas as pl
from jax.experimental.pallas import tpu as pltpu


# --------------------------- Pallas kernels -----------------------------------

def _protype_kernel_rows(x_ref, wt_ref, bt_ref, w_ref, G_ref, hwsq_ref,
                         pre_ref, emb_ref):
    """Row-major (batch-in-sublanes) fused forward: used for small batches."""
    # Linear(10, 10) + softmax over classes (lane axis).
    y = jnp.dot(x_ref[...], wt_ref[...],
                preferred_element_type=jnp.float32) + bt_ref[...]
    y = y - jnp.max(y, axis=-1, keepdims=True)
    ey = jnp.exp(y)
    p = ey / jnp.sum(ey, axis=-1, keepdims=True)                       # (B, C)

    # e = p @ w  and  cross = e @ w^T = p @ (w w^T) = p @ G : both depend only
    # on p, so they pipeline back-to-back on the MXU.
    emb_ref[...] = jnp.dot(p, w_ref[...],
                           preferred_element_type=jnp.float32)         # (B, K)
    # softmax(-0.5*||e - w_c||^2) == softmax(e.w_c - 0.5*||w_c||^2)  (shift inv.)
    z = jnp.dot(p, G_ref[...],
                preferred_element_type=jnp.float32) - hwsq_ref[...]    # (B, C)
    z = z - jnp.max(z, axis=-1, keepdims=True)
    ez = jnp.exp(z)
    pre_ref[...] = ez / jnp.sum(ez, axis=-1, keepdims=True)


def _protype_kernel_lanes(xT_ref, wlin_ref, b_ref, wT_ref, G_ref, hwsq_ref,
                          preT_ref, embT_ref):
    """Batch-as-lane (transposed) fused forward: used for large batches.

    All tensors are (channels, TM) with TM a multiple of 128, so vregs are full
    and the output stores are unmasked lane-dense vst.
    """
    yT = jnp.dot(wlin_ref[...], xT_ref[...],
                 preferred_element_type=jnp.float32) + b_ref[...]       # (C, TM)
    yT = yT - jnp.max(yT, axis=0, keepdims=True)
    ey = jnp.exp(yT)
    pT = ey / jnp.sum(ey, axis=0, keepdims=True)                        # (C, TM)

    embT_ref[...] = jnp.dot(wT_ref[...], pT,
                            preferred_element_type=jnp.float32)         # (K, TM)
    z = jnp.dot(G_ref[...], pT,
                preferred_element_type=jnp.float32) - hwsq_ref[...]     # (C, TM)
    z = z - jnp.max(z, axis=0, keepdims=True)
    ez = jnp.exp(z)
    preT_ref[...] = ez / jnp.sum(ez, axis=0, keepdims=True)


# --------------------------- Wrapper ------------------------------------------

def protype_pallas(x, params):
    """x: (B, 10) float32. Returns (pre (B, 10), emb (B, 6))."""
    B, Din = x.shape
    wt = params["wt"]                  # (Din, Dhid) — torch Linear weight^T
    bt = params["bt"]                  # (1, Dhid)
    w = params["w"]                    # (C, K) prototypes
    Dhid = wt.shape[1]
    C, K = w.shape

    # Parameter-side constants folded once in the wrapper (no in-kernel
    # transposes / relayouts, no per-row ||e||^2 needed thanks to shift inv.).
    G = jnp.dot(w, w.T)                                  # (C, C) Gram matrix
    hwsq = 0.5 * jnp.sum(w * w, axis=-1)                 # (C,)

    if B < 128:
        # Small batch: one grid step, whole batch in one block. Splitting here
        # only pays per-step overhead (1 TC on v5e/v6e; net-negative on v7x too).
        pre, emb = pl.pallas_call(
            _protype_kernel_rows,
            out_shape=(jax.ShapeDtypeStruct((B, C), jnp.float32),
                       jax.ShapeDtypeStruct((B, K), jnp.float32)),
            grid=(1,),
            in_specs=[pl.BlockSpec((B, Din), lambda i: (0, 0)),
                      pl.BlockSpec((Din, Dhid), lambda i: (0, 0)),
                      pl.BlockSpec((1, Dhid), lambda i: (0, 0)),
                      pl.BlockSpec((C, K), lambda i: (0, 0)),
                      pl.BlockSpec((C, C), lambda i: (0, 0)),
                      pl.BlockSpec((1, C), lambda i: (0, 0))],
            out_specs=(pl.BlockSpec((B, C), lambda i: (0, 0)),
                       pl.BlockSpec((B, K), lambda i: (0, 0))),
            compiler_params=pltpu.CompilerParams(
                dimension_semantics=("arbitrary",)),
        )(x, wt, bt, w, G, hwsq.reshape(1, C))
        return pre, emb

    # Large batch: batch is the lane (last) axis so vregs are full and stores
    # are unmasked. Only split the grid when tiles are big enough (>= 512) to
    # hide per-step overhead; otherwise one step covers the whole batch.
    TM = 512 if B >= 1024 else pl.cdiv(B, 128) * 128
    Bp = pl.cdiv(B, TM) * TM
    xT = jnp.pad(x, ((0, Bp - B), (0, 0))).T             # (Din, Bp)
    wlin = wt.T                                          # (Dhid, Din)
    bcol = bt.reshape(Dhid, 1)
    wT = w.T                                             # (K, C)

    preT, embT = pl.pallas_call(
        _protype_kernel_lanes,
        out_shape=(jax.ShapeDtypeStruct((C, Bp), jnp.float32),
                   jax.ShapeDtypeStruct((K, Bp), jnp.float32)),
        grid=(Bp // TM,),
        in_specs=[pl.BlockSpec((Din, TM), lambda i: (0, i)),
                  pl.BlockSpec((Dhid, Din), lambda i: (0, 0)),
                  pl.BlockSpec((Dhid, 1), lambda i: (0, 0)),
                  pl.BlockSpec((K, C), lambda i: (0, 0)),
                  pl.BlockSpec((C, C), lambda i: (0, 0)),
                  pl.BlockSpec((C, 1), lambda i: (0, 0))],
        out_specs=(pl.BlockSpec((C, TM), lambda i: (0, i)),
                   pl.BlockSpec((K, TM), lambda i: (0, i))),
        compiler_params=pltpu.CompilerParams(
            dimension_semantics=("parallel",)),
    )(xT, wlin, bcol, wT, G, hwsq.reshape(C, 1))

    pre = preT.T[:B]
    emb = embT.T[:B]
    return pre, emb


# --------------------------- Reference (pure JAX) -----------------------------

def protype_ref(x, params):
    y = x @ params["wt"] + params["bt"][0]
    p = jax.nn.softmax(y, axis=-1)
    e = p @ params["w"]                                               # (B, K)
    # Literal spec: (sum((e-w)**2, -1) ** 1) / 2  == 0.5 * ||e - w_c||^2
    d = jnp.sum((e[:, None, :] - params["w"][None, :, :]) ** 2, axis=-1) / 2.0
    pre = jax.nn.softmax(-d, axis=-1)
    return pre, e


# --------------------------- Main ---------------------------------------------

if __name__ == "__main__":
    # Protype(classnum=10): Linear(10,10), prototypes w: (10, 6).
    DIN, CLASSNUM, PROTO_DIM = 10, 10, 6

    key = jax.random.PRNGKey(0)
    kw, kb, kp, kx = jax.random.split(key, 4)
    params = {
        # torch Linear stores W (out, in); we keep W^T so forward is x @ wt + b.
        "wt": 0.3 * jax.random.normal(kw, (DIN, CLASSNUM), jnp.float32),
        "bt": 0.1 * jax.random.normal(kb, (1, CLASSNUM), jnp.float32),
        "w": jax.random.normal(kp, (CLASSNUM, PROTO_DIM), jnp.float32),
    }

    # B=64  -> small-batch row-major single-step path
    # B=300 -> lane-major path with padding (Bp=384), single step
    # B=1100-> lane-major path, TM=512, grid=(3,) "parallel" (both v7x TCs)
    for B in (64, 300, 1100):
        kx, sub = jax.random.split(kx)
        x = jax.random.normal(sub, (B, DIN), jnp.float32)

        pre, emb = protype_pallas(x, params)
        pre = jax.block_until_ready(pre)
        emb = jax.block_until_ready(emb)

        pre_ref, emb_ref = protype_ref(x, params)
        pre_ref = jax.block_until_ready(pre_ref)
        emb_ref = jax.block_until_ready(emb_ref)

        assert pre.shape == (B, CLASSNUM), pre.shape
        assert emb.shape == (B, PROTO_DIM), emb.shape
        err_pre = float(jnp.max(jnp.abs(pre - pre_ref)))
        err_emb = float(jnp.max(jnp.abs(emb - emb_ref)))
        assert err_pre < 1e-4, f"B={B}: pre max abs error {err_pre}"
        assert err_emb < 1e-4, f"B={B}: emb max abs error {err_emb}"

    # TODO(synk): training-time methods (update_param / update / SCELoss) are
    # optimizer & loss logic, not part of forward, and are not implemented here.

    print("KERNEL_OK")
</pallas_src>

<mosaic_0001>
module attributes {stable_mosaic.version = 11 : i64} {
  func.func @_protype_kernel_rows(%arg0: i32, %arg1: memref<64x10xf32, #tpu.memory_space<vmem>>, %arg2: memref<10x10xf32, #tpu.memory_space<vmem>>, %arg3: memref<1x10xf32, #tpu.memory_space<vmem>>, %arg4: memref<10x6xf32, #tpu.memory_space<vmem>>, %arg5: memref<10x10xf32, #tpu.memory_space<vmem>>, %arg6: memref<1x10xf32, #tpu.memory_space<vmem>>, %arg7: memref<64x10xf32, #tpu.memory_space<vmem>>, %arg8: memref<64x6xf32, #tpu.memory_space<vmem>>) attributes {dimension_semantics = [#tpu.dimension_semantics<arbitrary>], iteration_bounds = array<i64: 1>, scalar_prefetch = 0 : i64, scratch_operands = 0 : i64, tpu.core_type = #tpu.core_type<tc>, window_params = [{pipeline_mode = #tpu.pipeline_mode<synchronous>, transform_indices = @transform_0, window_bounds = array<i64: 64, 10>}, {pipeline_mode = #tpu.pipeline_mode<synchronous>, transform_indices = @transform_1, window_bounds = array<i64: 10, 10>}, {pipeline_mode = #tpu.pipeline_mode<synchronous>, transform_indices = @transform_2, window_bounds = array<i64: 1, 10>}, {pipeline_mode = #tpu.pipeline_mode<synchronous>, transform_indices = @transform_3, window_bounds = array<i64: 10, 6>}, {pipeline_mode = #tpu.pipeline_mode<synchronous>, transform_indices = @transform_4, window_bounds = array<i64: 10, 10>}, {pipeline_mode = #tpu.pipeline_mode<synchronous>, transform_indices = @transform_5, window_bounds = array<i64: 1, 10>}, {pipeline_mode = #tpu.pipeline_mode<synchronous>, transform_indices = @transform_6, window_bounds = array<i64: 64, 10>}, {pipeline_mode = #tpu.pipeline_mode<synchronous>, transform_indices = @transform_7, window_bounds = array<i64: 64, 6>}]} {
    %c0 = arith.constant 0 : index
    %c0_0 = arith.constant 0 : index
    %0 = vector.load %arg1[%c0, %c0_0] : memref<64x10xf32, #tpu.memory_space<vmem>>, vector<64x10xf32>
    %c0_1 = arith.constant 0 : index
    %c0_2 = arith.constant 0 : index
    %1 = vector.load %arg2[%c0_1, %c0_2] : memref<10x10xf32, #tpu.memory_space<vmem>>, vector<10x10xf32>
    %cst = arith.constant dense<0.000000e+00> : vector<64x10xf32>
    %2 = tpu.matmul %0, %1, %cst {dimension_numbers = #tpu.dot_dimension_numbers<[1], [0], [0], [1], [0, 0, 1, 1], [], []>} : vector<64x10xf32>, vector<10x10xf32>, vector<64x10xf32> -> vector<64x10xf32>
    %c0_3 = arith.constant 0 : index
    %c0_4 = arith.constant 0 : index
    %3 = vector.load %arg3[%c0_3, %c0_4] : memref<1x10xf32, #tpu.memory_space<vmem>>, vector<1x10xf32>
    %4 = vector.broadcast %3 : vector<1x10xf32> to vector<64x10xf32>
    %5 = arith.addf %2, %4 : vector<64x10xf32>
    %cst_5 = arith.constant dense<0xFF800000> : vector<64xf32>
    %6 = vector.multi_reduction <maximumf>, %5, %cst_5 [1] : vector<64x10xf32> to vector<64xf32>
    %7 = vector.shape_cast %6 : vector<64xf32> to vector<64x1xf32>
    %8 = vector.broadcast %7 : vector<64x1xf32> to vector<64x10xf32>
    %9 = arith.subf %5, %8 : vector<64x10xf32>
    %10 = math.exp %9 : vector<64x10xf32>
    %cst_6 = arith.constant dense<0.000000e+00> : vector<64xf32>
    %11 = vector.multi_reduction <add>, %10, %cst_6 [1] : vector<64x10xf32> to vector<64xf32>
    %12 = vector.shape_cast %11 : vector<64xf32> to vector<64x1xf32>
    %13 = vector.broadcast %12 : vector<64x1xf32> to vector<64x10xf32>
    %14 = arith.divf %10, %13 : vector<64x10xf32>
    %c0_7 = arith.constant 0 : index
    %c0_8 = arith.constant 0 : index
    %15 = vector.load %arg4[%c0_7, %c0_8] : memref<10x6xf32, #tpu.memory_space<vmem>>, vector<10x6xf32>
    %cst_9 = arith.constant dense<0.000000e+00> : vector<64x6xf32>
    %16 = tpu.matmul %14, %15, %cst_9 {dimension_numbers = #tpu.dot_dimension_numbers<[1], [0], [0], [1], [0, 0, 1, 1], [], []>} : vector<64x10xf32>, vector<10x6xf32>, vector<64x6xf32> -> vector<64x6xf32>
    %c0_10 = arith.constant 0 : index
    %c0_11 = arith.constant 0 : index
    %17 = vector.load %arg8[%c0_10, %c0_11] : memref<64x6xf32, #tpu.memory_space<vmem>>, vector<64x6xf32>
    tpu.vector_store %arg8[%c0_10, %c0_11], %16 {strides = array<i32>} : memref<64x6xf32, #tpu.memory_space<vmem>>, vector<64x6xf32>,
    %c0_12 = arith.constant 0 : index
    %c0_13 = arith.constant 0 : index
    %18 = vector.load %arg5[%c0_12, %c0_13] : memref<10x10xf32, #tpu.memory_space<vmem>>, vector<10x10xf32>
    %cst_14 = arith.constant dense<0.000000e+00> : vector<64x10xf32>
    %19 = tpu.matmul %14, %18, %cst_14 {dimension_numbers = #tpu.dot_dimension_numbers<[1], [0], [0], [1], [0, 0, 1, 1], [], []>} : vector<64x10xf32>, vector<10x10xf32>, vector<64x10xf32> -> vector<64x10xf32>
    %c0_15 = arith.constant 0 : index
    %c0_16 = arith.constant 0 : index
    %20 = vector.load %arg6[%c0_15, %c0_16] : memref<1x10xf32, #tpu.memory_space<vmem>>, vector<1x10xf32>
    %21 = vector.broadcast %20 : vector<1x10xf32> to vector<64x10xf32>
    %22 = arith.subf %19, %21 : vector<64x10xf32>
    %cst_17 = arith.constant dense<0xFF800000> : vector<64xf32>
    %23 = vector.multi_reduction <maximumf>, %22, %cst_17 [1] : vector<64x10xf32> to vector<64xf32>
    %24 = vector.shape_cast %23 : vector<64xf32> to vector<64x1xf32>
    %25 = vector.broadcast %24 : vector<64x1xf32> to vector<64x10xf32>
    %26 = arith.subf %22, %25 : vector<64x10xf32>
    %27 = math.exp %26 : vector<64x10xf32>
    %cst_18 = arith.constant dense<0.000000e+00> : vector<64xf32>
    %28 = vector.multi_reduction <add>, %27, %cst_18 [1] : vector<64x10xf32> to vector<64xf32>
    %29 = vector.shape_cast %28 : vector<64xf32> to vector<64x1xf32>
    %30 = vector.broadcast %29 : vector<64x1xf32> to vector<64x10xf32>
    %31 = arith.divf %27, %30 : vector<64x10xf32>
    %c0_19 = arith.constant 0 : index
    %c0_20 = arith.constant 0 : index
    %32 = vector.load %arg7[%c0_19, %c0_20] : memref<64x10xf32, #tpu.memory_space<vmem>>, vector<64x10xf32>
    tpu.vector_store %arg7[%c0_19, %c0_20], %31 {strides = array<i32>} : memref<64x10xf32, #tpu.memory_space<vmem>>, vector<64x10xf32>,
    return
  }
  func.func @transform_0(%arg0: i32) -> (i32, i32) {
    %c0_i32 = arith.constant 0 : i32
    %c0_i32_0 = arith.constant 0 : i32
    %c0_i32_1 = arith.constant 0 : i32
    return %c0_i32, %c0_i32_0 : i32, i32
  }
  func.func @transform_1(%arg0: i32) -> (i32, i32) {
    %c0_i32 = arith.constant 0 : i32
    %c0_i32_0 = arith.constant 0 : i32
    %c0_i32_1 = arith.constant 0 : i32
    return %c0_i32, %c0_i32_0 : i32, i32
  }
  func.func @transform_2(%arg0: i32) -> (i32, i32) {
    %c0_i32 = arith.constant 0 : i32
    %c0_i32_0 = arith.constant 0 : i32
    %c0_i32_1 = arith.constant 0 : i32
    return %c0_i32, %c0_i32_0 : i32, i32
  }
  func.func @transform_3(%arg0: i32) -> (i32, i32) {
    %c0_i32 = arith.constant 0 : i32
    %c0_i32_0 = arith.constant 0 : i32
    %c0_i32_1 = arith.constant 0 : i32
    return %c0_i32, %c0_i32_0 : i32, i32
  }
  func.func @transform_4(%arg0: i32) -> (i32, i32) {
    %c0_i32 = arith.constant 0 : i32
    %c0_i32_0 = arith.constant 0 : i32
    %c0_i32_1 = arith.constant 0 : i32
    return %c0_i32, %c0_i32_0 : i32, i32
  }
  func.func @transform_5(%arg0: i32) -> (i32, i32) {
    %c0_i32 = arith.constant 0 : i32
    %c0_i32_0 = arith.constant 0 : i32
    %c0_i32_1 = arith.constant 0 : i32
    return %c0_i32, %c0_i32_0 : i32, i32
  }
  func.func @transform_6(%arg0: i32) -> (i32, i32) {
    %c0_i32 = arith.constant 0 : i32
    %c0_i32_0 = arith.constant 0 : i32
    %c0_i32_1 = arith.constant 0 : i32
    return %c0_i32, %c0_i32_0 : i32, i32
  }
  func.func @transform_7(%arg0: i32) -> (i32, i32) {
    %c0_i32 = arith.constant 0 : i32
    %c0_i32_0 = arith.constant 0 : i32
    %c0_i32_1 = arith.constant 0 : i32
    return %c0_i32, %c0_i32_0 : i32, i32
  }
}

</mosaic_0001>

<llo_original>
// kernel: tpu_custom_call.1
$region0: #{tpu_custom_call.1}
  #allocation0 [shape = 'u32[]', space=smem, size = 0x4, offset = 0x4, fixed_abs, tag = 'smem constant byte address 0x4 - core index']
  #allocation1 [shape = 'u32[144,128]{1,0:T(1,128)}', space=vmem, size = 0x12000, scoped, tag = 'internal scratch']
  %s0 = inlined_call_operand.vmem [shape: f32[64,10], index: 0, kind: input, shape index: {}]
  %s1 = inlined_call_operand.vmem [shape: f32[10,10], index: 1, kind: input, shape index: {}]
  %s2 = inlined_call_operand.vmem [shape: f32[1,10], index: 2, kind: input, shape index: {}]
  %s3 = inlined_call_operand.vmem [shape: f32[10,6], index: 3, kind: input, shape index: {}]
  %s4 = inlined_call_operand.vmem [shape: f32[10,10], index: 4, kind: input, shape index: {}]
  %s5 = inlined_call_operand.vmem [shape: f32[1,10], index: 5, kind: input, shape index: {}]
  %s6 = inlined_call_operand.vmem [shape: f32[64,10], index: 6, kind: output, shape index: {0}]
  %s7 = inlined_call_operand.vmem [shape: f32[64,6], index: 7, kind: output, shape index: {1}]
  %8 = xla_tuple %s6, %s7
  %s9 = sld [smem:[#allocation0]]
  $region42: #{tpu_custom_call.1} parent=0
    _
  %s11 = ssub.s32 1, %s9
  %s12 = scalar_select 0, %s11, %s9
  // Predicated region
  $region2: #{tpu_custom_call.1} parent=0 // pred_check
    _
  $region3: #{tpu_custom_call.1} parent=0 // pred_check_branch
    %14 = sbr.rel (0) target = $region5
  $region4: #{tpu_custom_call.1} parent=0 // pred_region
    _
  $region5: #{tpu_custom_call.1} parent=0 // pred_fallthru
    _
  // Predicated region
  $region6: #{tpu_custom_call.1} parent=0 // pred_check
    _
  $region7: #{tpu_custom_call.1} parent=0 // pred_check_branch
    %16 = sbr.rel (0) target = $region9
  $region8: #{tpu_custom_call.1} parent=0 // pred_region
    _
  $region9: #{tpu_custom_call.1} parent=0 // pred_fallthru
    _
  // Predicated region
  $region10: #{tpu_custom_call.1} parent=0 // pred_check
    _
  $region11: #{tpu_custom_call.1} parent=0 // pred_check_branch
    %18 = sbr.rel (0) target = $region13
  $region12: #{tpu_custom_call.1} parent=0 // pred_region
    _
  $region13: #{tpu_custom_call.1} parent=0 // pred_fallthru
    _
  // Predicated region
  $region14: #{tpu_custom_call.1} parent=0 // pred_check
    _
  $region15: #{tpu_custom_call.1} parent=0 // pred_check_branch
    %20 = sbr.rel (0) target = $region17
  $region16: #{tpu_custom_call.1} parent=0 // pred_region
    _
  $region17: #{tpu_custom_call.1} parent=0 // pred_fallthru
    _
  // Predicated region
  $region18: #{tpu_custom_call.1} parent=0 // pred_check
    _
  $region19: #{tpu_custom_call.1} parent=0 // pred_check_branch
    %22 = sbr.rel (0) target = $region21
  $region20: #{tpu_custom_call.1} parent=0 // pred_region
    _
  $region21: #{tpu_custom_call.1} parent=0 // pred_fallthru
    _
  // Predicated region
  $region22: #{tpu_custom_call.1} parent=0 // pred_check
    _
  $region23: #{tpu_custom_call.1} parent=0 // pred_check_branch
    %24 = sbr.rel (0) target = $region25
  $region24: #{tpu_custom_call.1} parent=0 // pred_region
    _
  $region25: #{tpu_custom_call.1} parent=0 // pred_fallthru
    _
  %v25 = vld [vmem:[%s0] sm:$0xff]
  %v26 = vld [vmem:[%s0 + $0x8] sm:$0xff]
  %v27 = vld [vmem:[%s0 + $0x10] sm:$0xff]
  %v28 = vld [vmem:[%s0 + $0x18] sm:$0xff]
  %v29 = vld [vmem:[%s0 + $0x20] sm:$0xff]
  %v30 = vld [vmem:[%s0 + $0x28] sm:$0xff]
  %v31 = vld [vmem:[%s0 + $0x30] sm:$0xff]
  %v32 = vld [vmem:[%s0 + $0x38] sm:$0xff]
  %v33 = vld [vmem:[%s1] sm:$0xff]
  %v34 = vld [vmem:[%s1 + $0x8] sm:$0x3]
  %v35 = vld [vmem:[%s2] sm:$0x1]
  %v37 = vlaneseq
  %v38 = vshrl.u32 %v37, 7
  %v39 = vsub.s32 0, %v38
  %v40 = vrot.slane %v35, %v39
  %vm42 = vcmask 80896
  %v44 = vsel %vm42, %v25, 0
  %v47 = vsel %vm42, %v26, 0
  %v50 = vsel %vm42, %v27, 0
  %v53 = vsel %vm42, %v28, 0
  %v56 = vsel %vm42, %v29, 0
  %v59 = vsel %vm42, %v30, 0
  %v62 = vsel %vm42, %v31, 0
  %v65 = vsel %vm42, %v32, 0
  %vm67 = vcmask 1041408
  %v69 = vsel %vm67, %v34, 0
  %71 = vmatprep.subr.mxu0 0.0
  %72 = vmatpush1.msra.mxu0 %v33
  %73 = vmatprep.subr.mxu0 0.0
  %74 = vmatpush1.msra.mxu0 %v69
  %75 = vmatprep.subr.mxu0 0.0
  %76 = vmatpush1.msra.mxu0 0.0
  %77 = vmatprep.subr.mxu0 0.0
  %78 = vmatpush1.msra.mxu0 0.0
  %79 = vmatprep.subr.mxu0 0.0
  %80 = vmatpush1.msra.mxu0 0.0
  %81 = vmatprep.subr.mxu0 0.0
  %82 = vmatpush1.msra.mxu0 0.0
  %83 = vmatprep.subr.mxu0 0.0
  %84 = vmatpush1.msra.mxu0 0.0
  %85 = vmatprep.subr.mxu0 0.0
  %86 = vmatpush1.msra.mxu0 0.0
  %87 = vmatprep.subr.mxu0 0.0
  %88 = vmatpush1.msra.mxu0 0.0
  %89 = vmatprep.subr.mxu0 0.0
  %90 = vmatpush1.msra.mxu0 0.0
  %91 = vmatprep.subr.mxu0 0.0
  %92 = vmatpush1.msra.mxu0 0.0
  %93 = vmatprep.subr.mxu0 0.0
  %94 = vmatpush1.msra.mxu0 0.0
  %95 = vmatprep.subr.mxu0 0.0
  %96 = vmatpush1.msra.mxu0 0.0
  %97 = vmatprep.subr.mxu0 0.0
  %98 = vmatpush1.msra.mxu0 0.0
  %99 = vmatprep.subr.mxu0 0.0
  %100 = vmatpush1.msra.mxu0 0.0
  %101 = vmatprep.subr.mxu0 0.0
  %102 = vmatpush1.msra.mxu0 0.0
  %103 = vmatprep.subr.mxu0 0.0
  %104 = vmatpush1.msra.mxu0 0.0
  %105 = vmatprep.subr.mxu0 0.0
  %106 = vmatpush1.msra.mxu0 0.0
  %107 = vmatprep.subr.mxu0 0.0
  %108 = vmatpush1.msra.mxu0 0.0
  %109 = vmatprep.subr.mxu0 0.0
  %110 = vmatpush1.msra.mxu0 0.0
  %111 = vmatprep.subr.mxu0 0.0
  %112 = vmatpush1.msra.mxu0 0.0
  %113 = vmatprep.subr.mxu0 0.0
  %114 = vmatpush1.msra.mxu0 0.0
  %115 = vmatprep.subr.mxu0 0.0
  %116 = vmatpush1.msra.mxu0 0.0
  %117 = vmatprep.subr.mxu0 0.0
  %118 = vmatpush1.msra.mxu0 0.0
  %119 = vmatprep.subr.mxu0 0.0
  %120 = vmatpush1.msra.mxu0 0.0
  %121 = vmatprep.subr.mxu0 0.0
  %122 = vmatpush1.msra.mxu0 0.0
  %123 = vmatprep.subr.mxu0 0.0
  %124 = vmatpush1.msra.mxu0 0.0
  %125 = vmatprep.subr.mxu0 0.0
  %126 = vmatpush1.msra.mxu0 0.0
  %127 = vmatprep.subr.mxu0 0.0
  %128 = vmatpush1.msra.mxu0 0.0
  %129 = vmatprep.subr.mxu0 0.0
  %130 = vmatpush1.msra.mxu0 0.0
  %131 = vmatprep.subr.mxu0 0.0
  %132 = vmatpush1.msra.mxu0 0.0
  %133 = vmatprep.subr.mxu0 0.0
  %134 = vmatpush1.msra.mxu0 0.0
  %135 = vmatprep.mubr.f32.mxu0 0.0
  %136 = vmatmul.mubr.f32.gmra.mrb[0].mxu0 %v44
  %v137 = vpop.f32.mrb[0].mxu0
  %v138 = vadd.f32 %v40, %v137
  %v139 = vpop.f32.mrb[0].mxu0
  %140 = vmatprep.mubr.f32.mxu0 0.0
  %141 = vmatmul.mubr.f32.gmra.mrb[0].mxu0 %v47
  %v142 = vpop.f32.mrb[0].mxu0
  %v143 = vadd.f32 %v40, %v142
  %v144 = vpop.f32.mrb[0].mxu0
  %145 = vmatprep.mubr.f32.mxu0 0.0
  %146 = vmatmul.mubr.f32.gmra.mrb[0].mxu0 %v50
  %v147 = vpop.f32.mrb[0].mxu0
  %v148 = vadd.f32 %v40, %v147
  %v149 = vpop.f32.mrb[0].mxu0
  %150 = vmatprep.mubr.f32.mxu0 0.0
  %151 = vmatmul.mubr.f32.gmra.mrb[0].mxu0 %v53
  %v152 = vpop.f32.mrb[0].mxu0
  %v153 = vadd.f32 %v40, %v152
  %v154 = vpop.f32.mrb[0].mxu0
  %155 = vmatprep.mubr.f32.mxu0 0.0
  %156 = vmatmul.mubr.f32.gmra.mrb[0].mxu0 %v56
  %v157 = vpop.f32.mrb[0].mxu0
  %v158 = vadd.f32 %v40, %v157
  %v159 = vpop.f32.mrb[0].mxu0
  %160 = vmatprep.mubr.f32.mxu0 0.0
  %161 = vmatmul.mubr.f32.gmra.mrb[0].mxu0 %v59
  %v162 = vpop.f32.mrb[0].mxu0
  %v163 = vadd.f32 %v40, %v162
  %v164 = vpop.f32.mrb[0].mxu0
  %165 = vmatprep.mubr.f32.mxu0 0.0
  %166 = vmatmul.mubr.f32.gmra.mrb[0].mxu0 %v62
  %v167 = vpop.f32.mrb[0].mxu0
  %v168 = vadd.f32 %v40, %v167
  %v169 = vpop.f32.mrb[0].mxu0
  %170 = vmatprep.mubr.f32.mxu0 0.0
  %171 = vmatmul.mubr.f32.gmra.mrb[0].mxu0 %v65
  %v172 = vpop.f32.mrb[0].mxu0
  %v173 = vadd.f32 %v40, %v172
  %v174 = vpop.f32.mrb[0].mxu0
  %175 = vdwg.mxu0
  %v176 = vsel %vm42, %v138, -inf
  %177 = vmax.xlane.f32.xlu0 %v176
  %v178 = vpop.xlane.xlu0 %177
  %v179 = vsel %vm42, %v143, -inf
  %180 = vmax.xlane.f32.xlu0 %v179
  %v181 = vpop.xlane.xlu0 %180
  %v182 = vsel %vm42, %v148, -inf
  %183 = vmax.xlane.f32.xlu0 %v182
  %v184 = vpop.xlane.xlu0 %183
  %v185 = vsel %vm42, %v153, -inf
  %186 = vmax.xlane.f32.xlu0 %v185
  %v187 = vpop.xlane.xlu0 %186
  %v188 = vsel %vm42, %v158, -inf
  %189 = vmax.xlane.f32.xlu0 %v188
  %v190 = vpop.xlane.xlu0 %189
  %v191 = vsel %vm42, %v163, -inf
  %192 = vmax.xlane.f32.xlu0 %v191
  %v193 = vpop.xlane.xlu0 %192
  %v194 = vsel %vm42, %v168, -inf
  %195 = vmax.xlane.f32.xlu0 %v194
  %v196 = vpop.xlane.xlu0 %195
  %v197 = vsel %vm42, %v173, -inf
  %198 = vmax.xlane.f32.xlu0 %v197
  %v199 = vpop.xlane.xlu0 %198
  %v200 = vsub.f32 %v138, %v178
  %v201 = vsub.f32 %v143, %v181
  %v202 = vsub.f32 %v148, %v184
  %v203 = vsub.f32 %v153, %v187
  %v204 = vsub.f32 %v158, %v190
  %v205 = vsub.f32 %v163, %v193
  %v206 = vsub.f32 %v168, %v196
  %v207 = vsub.f32 %v173, %v199
  %v208 = vmul.f32 %v200, 1.442695
  %v209 = vpow.pop %v208
  %v210 = vmul.f32 %v201, 1.442695
  %v211 = vpow.pop %v210
  %v212 = vmul.f32 %v202, 1.442695
  %v213 = vpow.pop %v212
  %v214 = vmul.f32 %v203, 1.442695
  %v215 = vpow.pop %v214
  %v216 = vmul.f32 %v204, 1.442695
  %v217 = vpow.pop %v216
  %v218 = vmul.f32 %v205, 1.442695
  %v219 = vpow.pop %v218
  %v220 = vmul.f32 %v206, 1.442695
  %v221 = vpow.pop %v220
  %v222 = vmul.f32 %v207, 1.442695
  %v223 = vpow.pop %v222
  %v224 = vsel %vm42, %v209, 0.0
  %225 = vadd.xlane.f32.xlu0 %v224
  %v226 = vpop.xlane.xlu0 %225
  %v227 = vsel %vm42, %v211, 0.0
  %228 = vadd.xlane.f32.xlu0 %v227
  %v229 = vpop.xlane.xlu0 %228
  %v230 = vsel %vm42, %v213, 0.0
  %231 = vadd.xlane.f32.xlu0 %v230
  %v232 = vpop.xlane.xlu0 %231
  %v233 = vsel %vm42, %v215, 0.0
  %234 = vadd.xlane.f32.xlu0 %v233
  %v235 = vpop.xlane.xlu0 %234
  %v236 = vsel %vm42, %v217, 0.0
  %237 = vadd.xlane.f32.xlu0 %v236
  %v238 = vpop.xlane.xlu0 %237
  %v239 = vsel %vm42, %v219, 0.0
  %240 = vadd.xlane.f32.xlu0 %v239
  %v241 = vpop.xlane.xlu0 %240
  %v242 = vsel %vm42, %v221, 0.0
  %243 = vadd.xlane.f32.xlu0 %v242
  %v244 = vpop.xlane.xlu0 %243
  %v245 = vsel %vm42, %v223, 0.0
  %246 = vadd.xlane.f32.xlu0 %v245
  %v247 = vpop.xlane.xlu0 %246
  %v248 = vrcp.pop %v226
  %v249 = vmul.f32 %v209, %v248
  %v250 = vrcp.pop %v229
  %v251 = vmul.f32 %v211, %v250
  %v252 = vrcp.pop %v232
  %v253 = vmul.f32 %v213, %v252
  %v254 = vrcp.pop %v235
  %v255 = vmul.f32 %v215, %v254
  %v256 = vrcp.pop %v238
  %v257 = vmul.f32 %v217, %v256
  %v258 = vrcp.pop %v241
  %v259 = vmul.f32 %v219, %v258
  %v260 = vrcp.pop %v244
  %v261 = vmul.f32 %v221, %v260
  %v262 = vrcp.pop %v247
  %v263 = vmul.f32 %v223, %v262
  %v264 = vld [vmem:[%s3] sm:$0xff]
  %v265 = vld [vmem:[%s3 + $0x8] sm:$0x3]
  %v267 = vsel %vm42, %v249, 0
  %v270 = vsel %vm42, %v251, 0
  %v273 = vsel %vm42, %v253, 0
  %v276 = vsel %vm42, %v255, 0
  %v279 = vsel %vm42, %v257, 0
  %v282 = vsel %vm42, %v259, 0
  %v285 = vsel %vm42, %v261, 0
  %v288 = vsel %vm42, %v263, 0
  %v291 = vsel %vm67, %v265, 0
  %293 = vmatprep.subr.mxu0 0.0
  %294 = vmatpush1.msra.mxu0 %v264
  %295 = vmatprep.subr.mxu0 0.0
  %296 = vmatpush1.msra.mxu0 %v291
  %297 = vmatprep.subr.mxu0 0.0
  %298 = vmatpush1.msra.mxu0 0.0
  %299 = vmatprep.subr.mxu0 0.0
  %300 = vmatpush1.msra.mxu0 0.0
  %301 = vmatprep.subr.mxu0 0.0
  %302 = vmatpush1.msra.mxu0 0.0
  %303 = vmatprep.subr.mxu0 0.0
  %304 = vmatpush1.msra.mxu0 0.0
  %305 = vmatprep.subr.mxu0 0.0
  %306 = vmatpush1.msra.mxu0 0.0
  %307 = vmatprep.subr.mxu0 0.0
  %308 = vmatpush1.msra.mxu0 0.0
  %309 = vmatprep.subr.mxu0 0.0
  %310 = vmatpush1.msra.mxu0 0.0
  %311 = vmatprep.subr.mxu0 0.0
  %312 = vmatpush1.msra.mxu0 0.0
  %313 = vmatprep.subr.mxu0 0.0
  %314 = vmatpush1.msra.mxu0 0.0
  %315 = vmatprep.subr.mxu0 0.0
  %316 = vmatpush1.msra.mxu0 0.0
  %317 = vmatprep.subr.mxu0 0.0
  %318 = vmatpush1.msra.mxu0 0.0
  %319 = vmatprep.subr.mxu0 0.0
  %320 = vmatpush1.msra.mxu0 0.0
  %321 = vmatprep.subr.mxu0 0.0
  %322 = vmatpush1.msra.mxu0 0.0
  %323 = vmatprep.subr.mxu0 0.0
  %324 = vmatpush1.msra.mxu0 0.0
  %325 = vmatprep.subr.mxu0 0.0
  %326 = vmatpush1.msra.mxu0 0.0
  %327 = vmatprep.subr.mxu0 0.0
  %328 = vmatpush1.msra.mxu0 0.0
  %329 = vmatprep.subr.mxu0 0.0
  %330 = vmatpush1.msra.mxu0 0.0
  %331 = vmatprep.subr.mxu0 0.0
  %332 = vmatpush1.msra.mxu0 0.0
  %333 = vmatprep.subr.mxu0 0.0
  %334 = vmatpush1.msra.mxu0 0.0
  %335 = vmatprep.subr.mxu0 0.0
  %336 = vmatpush1.msra.mxu0 0.0
  %337 = vmatprep.subr.mxu0 0.0
  %338 = vmatpush1.msra.mxu0 0.0
  %339 = vmatprep.subr.mxu0 0.0
  %340 = vmatpush1.msra.mxu0 0.0
  %341 = vmatprep.subr.mxu0 0.0
  %342 = vmatpush1.msra.mxu0 0.0
  %343 = vmatprep.subr.mxu0 0.0
  %344 = vmatpush1.msra.mxu0 0.0
  %345 = vmatprep.subr.mxu0 0.0
  %346 = vmatpush1.msra.mxu0 0.0
  %347 = vmatprep.subr.mxu0 0.0
  %348 = vmatpush1.msra.mxu0 0.0
  %349 = vmatprep.subr.mxu0 0.0
  %350 = vmatpush1.msra.mxu0 0.0
  %351 = vmatprep.subr.mxu0 0.0
  %352 = vmatpush1.msra.mxu0 0.0
  %353 = vmatprep.subr.mxu0 0.0
  %354 = vmatpush1.msra.mxu0 0.0
  %355 = vmatprep.subr.mxu0 0.0
  %356 = vmatpush1.msra.mxu0 0.0
  %357 = vmatprep.mubr.f32.mxu0 0.0
  %358 = vmatmul.mubr.f32.gmra.mrb[0].mxu0 %v267
  %v359 = vpop.f32.mrb[0].mxu0
  %v360 = vadd.f32 0.0, %v359
  %v361 = vpop.f32.mrb[0].mxu0
  %362 = vmatprep.mubr.f32.mxu0 0.0
  %363 = vmatmul.mubr.f32.gmra.mrb[0].mxu0 %v270
  %v364 = vpop.f32.mrb[0].mxu0
  %v365 = vadd.f32 0.0, %v364
  %v366 = vpop.f32.mrb[0].mxu0
  %367 = vmatprep.mubr.f32.mxu0 0.0
  %368 = vmatmul.mubr.f32.gmra.mrb[0].mxu0 %v273
  %v369 = vpop.f32.mrb[0].mxu0
  %v370 = vadd.f32 0.0, %v369
  %v371 = vpop.f32.mrb[0].mxu0
  %372 = vmatprep.mubr.f32.mxu0 0.0
  %373 = vmatmul.mubr.f32.gmra.mrb[0].mxu0 %v276
  %v374 = vpop.f32.mrb[0].mxu0
  %v375 = vadd.f32 0.0, %v374
  %v376 = vpop.f32.mrb[0].mxu0
  %377 = vmatprep.mubr.f32.mxu0 0.0
  %378 = vmatmul.mubr.f32.gmra.mrb[0].mxu0 %v279
  %v379 = vpop.f32.mrb[0].mxu0
  %v380 = vadd.f32 0.0, %v379
  %v381 = vpop.f32.mrb[0].mxu0
  %382 = vmatprep.mubr.f32.mxu0 0.0
  %383 = vmatmul.mubr.f32.gmra.mrb[0].mxu0 %v282
  %v384 = vpop.f32.mrb[0].mxu0
  %v385 = vadd.f32 0.0, %v384
  %v386 = vpop.f32.mrb[0].mxu0
  %387 = vmatprep.mubr.f32.mxu0 0.0
  %388 = vmatmul.mubr.f32.gmra.mrb[0].mxu0 %v285
  %v389 = vpop.f32.mrb[0].mxu0
  %v390 = vadd.f32 0.0, %v389
  %v391 = vpop.f32.mrb[0].mxu0
  %392 = vmatprep.mubr.f32.mxu0 0.0
  %393 = vmatmul.mubr.f32.gmra.mrb[0].mxu0 %v288
  %v394 = vpop.f32.mrb[0].mxu0
  %v395 = vadd.f32 0.0, %v394
  %v396 = vpop.f32.mrb[0].mxu0
  %397 = vdwg.mxu0
  %vm398 = vcmask 48128
  %399 = vst.msk [vmem:[%s7] sm:$0xff] %vm398, %v360
  %400 = vst.msk [vmem:[%s7 + $0x8] sm:$0xff] %vm398, %v365
  %401 = vst.msk [vmem:[%s7 + $0x10] sm:$0xff] %vm398, %v370
  %402 = vst.msk [vmem:[%s7 + $0x18] sm:$0xff] %vm398, %v375
  %403 = vst.msk [vmem:[%s7 + $0x20] sm:$0xff] %vm398, %v380
  %404 = vst.msk [vmem:[%s7 + $0x28] sm:$0xff] %vm398, %v385
  %405 = vst.msk [vmem:[%s7 + $0x30] sm:$0xff] %vm398, %v390
  %406 = vst.msk [vmem:[%s7 + $0x38] sm:$0xff] %vm398, %v395
  %v407 = vld [vmem:[%s4] sm:$0xff]
  %v408 = vld [vmem:[%s4 + $0x8] sm:$0x3]
  %v410 = vsel %vm67, %v408, 0
  %412 = vmatprep.subr.mxu0 0.0
  %413 = vmatpush1.msra.mxu0 %v407
  %414 = vmatprep.subr.mxu0 0.0
  %415 = vmatpush1.msra.mxu0 %v410
  %416 = vmatprep.subr.mxu0 0.0
  %417 = vmatpush1.msra.mxu0 0.0
  %418 = vmatprep.subr.mxu0 0.0
  %419 = vmatpush1.msra.mxu0 0.0
  %420 = vmatprep.subr.mxu0 0.0
  %421 = vmatpush1.msra.mxu0 0.0
  %422 = vmatprep.subr.mxu0 0.0
  %423 = vmatpush1.msra.mxu0 0.0
  %424 = vmatprep.subr.mxu0 0.0
  %425 = vmatpush1.msra.mxu0 0.0
  %426 = vmatprep.subr.mxu0 0.0
  %427 = vmatpush1.msra.mxu0 0.0
  %428 = vmatprep.subr.mxu0 0.0
  %429 = vmatpush1.msra.mxu0 0.0
  %430 = vmatprep.subr.mxu0 0.0
  %431 = vmatpush1.msra.mxu0 0.0
  %432 = vmatprep.subr.mxu0 0.0
  %433 = vmatpush1.msra.mxu0 0.0
  %434 = vmatprep.subr.mxu0 0.0
  %435 = vmatpush1.msra.mxu0 0.0
  %436 = vmatprep.subr.mxu0 0.0
  %437 = vmatpush1.msra.mxu0 0.0
  %438 = vmatprep.subr.mxu0 0.0
  %439 = vmatpush1.msra.mxu0 0.0
  %440 = vmatprep.subr.mxu0 0.0
  %441 = vmatpush1.msra.mxu0 0.0
  %442 = vmatprep.subr.mxu0 0.0
  %443 = vmatpush1.msra.mxu0 0.0
  %444 = vmatprep.subr.mxu0 0.0
  %445 = vmatpush1.msra.mxu0 0.0
  %446 = vmatprep.subr.mxu0 0.0
  %447 = vmatpush1.msra.mxu0 0.0
  %448 = vmatprep.subr.mxu0 0.0
  %449 = vmatpush1.msra.mxu0 0.0
  %450 = vmatprep.subr.mxu0 0.0
  %451 = vmatpush1.msra.mxu0 0.0
  %452 = vmatprep.subr.mxu0 0.0
  %453 = vmatpush1.msra.mxu0 0.0
  %454 = vmatprep.subr.mxu0 0.0
  %455 = vmatpush1.msra.mxu0 0.0
  %456 = vmatprep.subr.mxu0 0.0
  %457 = vmatpush1.msra.mxu0 0.0
  %458 = vmatprep.subr.mxu0 0.0
  %459 = vmatpush1.msra.mxu0 0.0
  %460 = vmatprep.subr.mxu0 0.0
  %461 = vmatpush1.msra.mxu0 0.0
  %462 = vmatprep.subr.mxu0 0.0
  %463 = vmatpush1.msra.mxu0 0.0
  %464 = vmatprep.subr.mxu0 0.0
  %465 = vmatpush1.msra.mxu0 0.0
  %466 = vmatprep.subr.mxu0 0.0
  %467 = vmatpush1.msra.mxu0 0.0
  %468 = vmatprep.subr.mxu0 0.0
  %469 = vmatpush1.msra.mxu0 0.0
  %470 = vmatprep.subr.mxu0 0.0
  %471 = vmatpush1.msra.mxu0 0.0
  %472 = vmatprep.subr.mxu0 0.0
  %473 = vmatpush1.msra.mxu0 0.0
  %474 = vmatprep.subr.mxu0 0.0
  %475 = vmatpush1.msra.mxu0 0.0
  %476 = vmatprep.mubr.f32.mxu0 0.0
  %477 = vmatmul.mubr.f32.gmra.mrb[0].mxu0 %v267
  %v478 = vpop.f32.mrb[0].mxu0
  %v479 = vadd.f32 0.0, %v478
  %v480 = vpop.f32.mrb[0].mxu0
  %481 = vmatprep.mubr.f32.mxu0 0.0
  %482 = vmatmul.mubr.f32.gmra.mrb[0].mxu0 %v270
  %v483 = vpop.f32.mrb[0].mxu0
  %v484 = vadd.f32 0.0, %v483
  %v485 = vpop.f32.mrb[0].mxu0
  %486 = vmatprep.mubr.f32.mxu0 0.0
  %487 = vmatmul.mubr.f32.gmra.mrb[0].mxu0 %v273
  %v488 = vpop.f32.mrb[0].mxu0
  %v489 = vadd.f32 0.0, %v488
  %v490 = vpop.f32.mrb[0].mxu0
  %491 = vmatprep.mubr.f32.mxu0 0.0
  %492 = vmatmul.mubr.f32.gmra.mrb[0].mxu0 %v276
  %v493 = vpop.f32.mrb[0].mxu0
  %v494 = vadd.f32 0.0, %v493
  %v495 = vpop.f32.mrb[0].mxu0
  %496 = vmatprep.mubr.f32.mxu0 0.0
  %497 = vmatmul.mubr.f32.gmra.mrb[0].mxu0 %v279
  %v498 = vpop.f32.mrb[0].mxu0
  %v499 = vadd.f32 0.0, %v498
  %v500 = vpop.f32.mrb[0].mxu0
  %501 = vmatprep.mubr.f32.mxu0 0.0
  %502 = vmatmul.mubr.f32.gmra.mrb[0].mxu0 %v282
  %v503 = vpop.f32.mrb[0].mxu0
  %v504 = vadd.f32 0.0, %v503
  %v505 = vpop.f32.mrb[0].mxu0
  %506 = vmatprep.mubr.f32.mxu0 0.0
  %507 = vmatmul.mubr.f32.gmra.mrb[0].mxu0 %v285
  %v508 = vpop.f32.mrb[0].mxu0
  %v509 = vadd.f32 0.0, %v508
  %v510 = vpop.f32.mrb[0].mxu0
  %511 = vmatprep.mubr.f32.mxu0 0.0
  %512 = vmatmul.mubr.f32.gmra.mrb[0].mxu0 %v288
  %v513 = vpop.f32.mrb[0].mxu0
  %v514 = vadd.f32 0.0, %v513
  %v515 = vpop.f32.mrb[0].mxu0
  %516 = vdwg.mxu0
  %v517 = vld [vmem:[%s5] sm:$0x1]
  %v519 = vlaneseq
  %v520 = vshrl.u32 %v519, 7
  %v521 = vsub.s32 0, %v520
  %v522 = vrot.slane %v517, %v521
  %v524 = vsub.f32 %v479, %v522
  %v525 = vsub.f32 %v484, %v522
  %v526 = vsub.f32 %v489, %v522
  %v527 = vsub.f32 %v494, %v522
  %v528 = vsub.f32 %v499, %v522
  %v529 = vsub.f32 %v504, %v522
  %v530 = vsub.f32 %v509, %v522
  %v531 = vsub.f32 %v514, %v522
  %v532 = vsel %vm42, %v524, -inf
  %533 = vmax.xlane.f32.xlu0 %v532
  %v534 = vpop.xlane.xlu0 %533
  %v535 = vsel %vm42, %v525, -inf
  %536 = vmax.xlane.f32.xlu0 %v535
  %v537 = vpop.xlane.xlu0 %536
  %v538 = vsel %vm42, %v526, -inf
  %539 = vmax.xlane.f32.xlu0 %v538
  %v540 = vpop.xlane.xlu0 %539
  %v541 = vsel %vm42, %v527, -inf
  %542 = vmax.xlane.f32.xlu0 %v541
  %v543 = vpop.xlane.xlu0 %542
  %v544 = vsel %vm42, %v528, -inf
  %545 = vmax.xlane.f32.xlu0 %v544
  %v546 = vpop.xlane.xlu0 %545
  %v547 = vsel %vm42, %v529, -inf
  %548 = vmax.xlane.f32.xlu0 %v547
  %v549 = vpop.xlane.xlu0 %548
  %v550 = vsel %vm42, %v530, -inf
  %551 = vmax.xlane.f32.xlu0 %v550
  %v552 = vpop.xlane.xlu0 %551
  %v553 = vsel %vm42, %v531, -inf
  %554 = vmax.xlane.f32.xlu0 %v553
  %v555 = vpop.xlane.xlu0 %554
  %v556 = vsub.f32 %v524, %v534
  %v557 = vsub.f32 %v525, %v537
  %v558 = vsub.f32 %v526, %v540
  %v559 = vsub.f32 %v527, %v543
  %v560 = vsub.f32 %v528, %v546
  %v561 = vsub.f32 %v529, %v549
  %v562 = vsub.f32 %v530, %v552
  %v563 = vsub.f32 %v531, %v555
  %v564 = vmul.f32 %v556, 1.442695
  %v565 = vpow.pop %v564
  %v566 = vmul.f32 %v557, 1.442695
  %v567 = vpow.pop %v566
  %v568 = vmul.f32 %v558, 1.442695
  %v569 = vpow.pop %v568
  %v570 = vmul.f32 %v559, 1.442695
  %v571 = vpow.pop %v570
  %v572 = vmul.f32 %v560, 1.442695
  %v573 = vpow.pop %v572
  %v574 = vmul.f32 %v561, 1.442695
  %v575 = vpow.pop %v574
  %v576 = vmul.f32 %v562, 1.442695
  %v577 = vpow.pop %v576
  %v578 = vmul.f32 %v563, 1.442695
  %v579 = vpow.pop %v578
  %v580 = vsel %vm42, %v565, 0.0
  %581 = vadd.xlane.f32.xlu0 %v580
  %v582 = vpop.xlane.xlu0 %581
  %v583 = vsel %vm42, %v567, 0.0
  %584 = vadd.xlane.f32.xlu0 %v583
  %v585 = vpop.xlane.xlu0 %584
  %v586 = vsel %vm42, %v569, 0.0
  %587 = vadd.xlane.f32.xlu0 %v586
  %v588 = vpop.xlane.xlu0 %587
  %v589 = vsel %vm42, %v571, 0.0
  %590 = vadd.xlane.f32.xlu0 %v589
  %v591 = vpop.xlane.xlu0 %590
  %v592 = vsel %vm42, %v573, 0.0
  %593 = vadd.xlane.f32.xlu0 %v592
  %v594 = vpop.xlane.xlu0 %593
  %v595 = vsel %vm42, %v575, 0.0
  %596 = vadd.xlane.f32.xlu0 %v595
  %v597 = vpop.xlane.xlu0 %596
  %v598 = vsel %vm42, %v577, 0.0
  %599 = vadd.xlane.f32.xlu0 %v598
  %v600 = vpop.xlane.xlu0 %599
  %v601 = vsel %vm42, %v579, 0.0
  %602 = vadd.xlane.f32.xlu0 %v601
  %v603 = vpop.xlane.xlu0 %602
  %v604 = vrcp.pop %v582
  %v605 = vmul.f32 %v565, %v604
  %v606 = vrcp.pop %v585
  %v607 = vmul.f32 %v567, %v606
  %v608 = vrcp.pop %v588
  %v609 = vmul.f32 %v569, %v608
  %v610 = vrcp.pop %v591
  %v611 = vmul.f32 %v571, %v610
  %v612 = vrcp.pop %v594
  %v613 = vmul.f32 %v573, %v612
  %v614 = vrcp.pop %v597
  %v615 = vmul.f32 %v575, %v614
  %v616 = vrcp.pop %v600
  %v617 = vmul.f32 %v577, %v616
  %v618 = vrcp.pop %v603
  %v619 = vmul.f32 %v579, %v618
  %620 = vst.msk [vmem:[%s6] sm:$0xff] %vm42, %v605
  %621 = vst.msk [vmem:[%s6 + $0x8] sm:$0xff] %vm42, %v607
  %622 = vst.msk [vmem:[%s6 + $0x10] sm:$0xff] %vm42, %v609
  %623 = vst.msk [vmem:[%s6 + $0x18] sm:$0xff] %vm42, %v611
  %624 = vst.msk [vmem:[%s6 + $0x20] sm:$0xff] %vm42, %v613
  %625 = vst.msk [vmem:[%s6 + $0x28] sm:$0xff] %vm42, %v615
  %626 = vst.msk [vmem:[%s6 + $0x30] sm:$0xff] %vm42, %v617
  %627 = vst.msk [vmem:[%s6 + $0x38] sm:$0xff] %vm42, %v619
  // Predicated region
  $region26: #{tpu_custom_call.1} parent=0 // pred_check
    _
  $region27: #{tpu_custom_call.1} parent=0 // pred_check_branch
    %629 = sbr.rel (0) target = $region29
  $region28: #{tpu_custom_call.1} parent=0 // pred_region
    _
  $region29: #{tpu_custom_call.1} parent=0 // pred_fallthru
    _
  // Predicated region
  $region30: #{tpu_custom_call.1} parent=0 // pred_check
    _
  $region31: #{tpu_custom_call.1} parent=0 // pred_check_branch
    %631 = sbr.rel (0) target = $region33
  $region32: #{tpu_custom_call.1} parent=0 // pred_region
    _
  $region33: #{tpu_custom_call.1} parent=0 // pred_fallthru
    _
  // Predicated region
  $region34: #{tpu_custom_call.1} parent=0 // pred_check
    _
  $region35: #{tpu_custom_call.1} parent=0 // pred_check_branch
    %633 = sbr.rel (0) target = $region37
  $region36: #{tpu_custom_call.1} parent=0 // pred_region
    _
  $region37: #{tpu_custom_call.1} parent=0 // pred_fallthru
    _
  // Predicated region
  $region38: #{tpu_custom_call.1} parent=0 // pred_check
    _
  $region39: #{tpu_custom_call.1} parent=0 // pred_check_branch
    %635 = sbr.rel (0) target = $region41
  $region40: #{tpu_custom_call.1} parent=0 // pred_region
    _
  $region41: #{tpu_custom_call.1} parent=0 // pred_fallthru
    _

</llo_original>
